<compile_context>
chip_gen: v5e
topology: v5e:2x2
jax: 0.10.0
libtpu: 0.0.40
codegen_flags: <defaults>
</compile_context>

<pallas_src>
import jax
import jax.numpy as jnp
from jax import lax
from jax.experimental import pallas as pl
from jax.experimental.pallas import tpu as pltpu


def _round_up(x, m):
    return ((x + m - 1) // m) * m


def edge_processor_kernel(hi_ref, hj_ref, e_ref,
                          w1a_ref, w1b_ref, w1c_ref, b1_ref,
                          w2_ref, b2_ref, g_ref, beta_ref,
                          o_ref):
    # h_i / h_j arrive as f32 straight from HBM; cast to bf16 in-register
    # (VPU filler hidden under the DMA) for the MXU operands.
    hi = hi_ref[...].astype(jnp.bfloat16)
    hj = hj_ref[...].astype(jnp.bfloat16)
    e_f32 = e_ref[...]                      # exact f32 kept for the residual
    e_bf = e_f32.astype(jnp.bfloat16)

    # First linear on the (virtual) concatenation [h_i, h_j, edge_attr]:
    #   cat(x) @ W1 == h_i @ W1_hi + h_j @ W1_hj + e @ W1_e
    # bf16 MXU inputs, f32 accumulation.
    h = (jnp.dot(hi, w1a_ref[...], preferred_element_type=jnp.float32)
         + jnp.dot(hj, w1b_ref[...], preferred_element_type=jnp.float32)
         + jnp.dot(e_bf, w1c_ref[...], preferred_element_type=jnp.float32)
         + b1_ref[...])
    h = jnp.maximum(h, 0.0)                 # ReLU (f32, VPU)

    # Second linear (bf16 MXU, f32 accumulate).
    y = (jnp.dot(h.astype(jnp.bfloat16), w2_ref[...],
                 preferred_element_type=jnp.float32)
         + b2_ref[...])

    # LayerNorm over features, eps = 1e-5 (torch default).  Two-pass stats:
    # numerically matches the reference and the second XLU reduction over 32
    # features is essentially free.
    mean = jnp.mean(y, axis=-1, keepdims=True)
    c = y - mean
    var = jnp.mean(c * c, axis=-1, keepdims=True)
    ln = c * lax.rsqrt(var + 1e-5) * g_ref[...] + beta_ref[...]

    # Residual in exact f32.
    o_ref[...] = e_f32 + ln


def edge_processor(h_i, h_j, edge_attr, params, *, tile_e=4096):
    E, d_h = h_i.shape
    d_e = edge_attr.shape[-1]
    H = params["w1_hi"].shape[-1]

    # Tile choice:
    #  * multiple of 16 (Mosaic (8,128) block constraint + bf16 sublane packing),
    #  * at least ~4 grid steps so both v7x TensorCores get work and there is
    #    something to software-pipeline,
    #  * large by default (4K rows) to amortize the ~0.35us per-step overhead,
    #  * shrunk if the double-buffered footprint would blow the VMEM budget.
    tile = max(16, min(int(tile_e), _round_up(pl.cdiv(E, 4), 16)))
    tile = _round_up(tile, 16)

    vmem_budget = 48 * 1024 * 1024          # safe on v5e/v6e (128 MiB) and v7x (64 MiB)

    def footprint(t):
        io = 2 * t * (2 * d_h + 2 * d_e) * 4                 # double-buffered in/out blocks
        scratch = t * H * (4 + 2) + t * (2 * d_h + d_e) * 2   # in-body temporaries (est.)
        weights = 2 * ((2 * d_h + d_e) * H + H * d_e) * 2 + 4 * (H + 3 * d_e)
        return io + scratch + weights

    while tile > 16 and footprint(tile) > vmem_budget:
        tile = _round_up(max(16, tile // 2), 16)

    grid = pl.cdiv(E, tile)   # no padding: the partial last block is masked on write

    # Weights are tiny -> wrapper-side bf16 cast is negligible; the big
    # activations stay f32 in HBM and are cast in-kernel.
    w1a = params["w1_hi"].astype(jnp.bfloat16)
    w1b = params["w1_hj"].astype(jnp.bfloat16)
    w1c = params["w1_e"].astype(jnp.bfloat16)
    w2 = params["w2"].astype(jnp.bfloat16)

    row_spec = lambda d: pl.BlockSpec((tile, d), lambda i: (i, 0))
    full_spec = lambda r, c: pl.BlockSpec((r, c), lambda i: (0, 0))

    vmem_limit = int(min(vmem_budget,
                         max(4 * footprint(tile), 32 * 1024 * 1024)))

    out = pl.pallas_call(
        edge_processor_kernel,
        out_shape=jax.ShapeDtypeStruct((E, d_e), jnp.float32),
        grid_spec=pltpu.PrefetchScalarGridSpec(
            num_scalar_prefetch=0,
            grid=(grid,),
            in_specs=[
                row_spec(d_h),            # h_i        (f32, cast in-kernel)
                row_spec(d_h),            # h_j        (f32, cast in-kernel)
                row_spec(d_e),            # edge_attr  (f32, exact for residual)
                full_spec(d_h, H),        # W1_hi      (bf16)
                full_spec(d_h, H),        # W1_hj      (bf16)
                full_spec(d_e, H),        # W1_e       (bf16)
                full_spec(1, H),          # b1         (f32)
                full_spec(H, d_e),        # W2         (bf16)
                full_spec(1, d_e),        # b2         (f32)
                full_spec(1, d_e),        # LN gamma   (f32)
                full_spec(1, d_e),        # LN beta    (f32)
            ],
            out_specs=row_spec(d_e),
        ),
        compiler_params=pltpu.CompilerParams(
            dimension_semantics=("parallel",),        # megacore split on v7x
            vmem_limit_bytes=vmem_limit,
        ),
    )(h_i, h_j, edge_attr,
      w1a, w1b, w1c, params["b1"],
      w2, params["b2"], params["gamma"], params["beta"])

    return out


def init_params(key, d_h, d_e, hidden):
    in_dim = 2 * d_h + d_e
    ks = jax.random.split(key, 4)
    s1 = 1.0 / jnp.sqrt(in_dim)
    s2 = 1.0 / jnp.sqrt(hidden)
    w1 = jax.random.uniform(ks[0], (in_dim, hidden), jnp.float32, -s1, s1)
    b1 = jax.random.uniform(ks[1], (1, hidden), jnp.float32, -s1, s1)
    w2 = jax.random.uniform(ks[2], (hidden, d_e), jnp.float32, -s2, s2)
    b2 = jax.random.uniform(ks[3], (1, d_e), jnp.float32, -s2, s2)
    return {
        "w1_hi": w1[:d_h],
        "w1_hj": w1[d_h:2 * d_h],
        "w1_e": w1[2 * d_h:],
        "b1": b1,
        "w2": w2,
        "b2": b2,
        "gamma": jnp.ones((1, d_e), jnp.float32),   # LayerNorm default init
        "beta": jnp.zeros((1, d_e), jnp.float32),
    }


def edge_processor_ref_f32(h_i, h_j, edge_attr, p):
    """Pure f32 reference (matches the PyTorch module)."""
    x = jnp.concatenate([h_i, h_j, edge_attr], axis=-1)
    w1 = jnp.concatenate([p["w1_hi"], p["w1_hj"], p["w1_e"]], axis=0)
    h = jnp.maximum(x @ w1 + p["b1"], 0.0)
    y = h @ p["w2"] + p["b2"]
    mean = jnp.mean(y, axis=-1, keepdims=True)
    var = jnp.mean((y - mean) ** 2, axis=-1, keepdims=True)
    ln = (y - mean) / jnp.sqrt(var + 1e-5) * p["gamma"] + p["beta"]
    return edge_attr + ln


def edge_processor_ref_mixed(h_i, h_j, edge_attr, p):
    """Mirrors the kernel's bf16-compute / f32-accumulate recipe."""
    bf, f32 = jnp.bfloat16, jnp.float32
    hi, hj, eb = h_i.astype(bf), h_j.astype(bf), edge_attr.astype(bf)
    h = (jnp.dot(hi, p["w1_hi"].astype(bf), preferred_element_type=f32)
         + jnp.dot(hj, p["w1_hj"].astype(bf), preferred_element_type=f32)
         + jnp.dot(eb, p["w1_e"].astype(bf), preferred_element_type=f32)
         + p["b1"])
    h = jnp.maximum(h, 0.0)
    y = (jnp.dot(h.astype(bf), p["w2"].astype(bf), preferred_element_type=f32)
         + p["b2"])
    mean = jnp.mean(y, axis=-1, keepdims=True)
    var = jnp.mean((y - mean) ** 2, axis=-1, keepdims=True)
    ln = (y - mean) * lax.rsqrt(var + 1e-5) * p["gamma"] + p["beta"]
    return edge_attr + ln


if __name__ == "__main__":
    # Small shapes; E deliberately not a multiple of the tile so the masked
    # partial final block is exercised (no wrapper-side padding anymore).
    E, d_h, d_e, hidden = 200, 32, 32, 64      # in_dim = 96, out_dim = 32

    key = jax.random.PRNGKey(0)
    k_hi, k_hj, k_e, k_p = jax.random.split(key, 4)
    h_i = jax.random.normal(k_hi, (E, d_h), jnp.float32)
    h_j = jax.random.normal(k_hj, (E, d_h), jnp.float32)
    edge_attr = jax.random.normal(k_e, (E, d_e), jnp.float32)
    params = init_params(k_p, d_h, d_e, hidden)

    ref_mixed = edge_processor_ref_mixed(h_i, h_j, edge_attr, params)
    ref_f32 = edge_processor_ref_f32(h_i, h_j, edge_attr, params)

    # Default path (tile auto-clamped; grid of 4 with a masked partial tail).
    out = jax.block_until_ready(edge_processor(h_i, h_j, edge_attr, params))
    assert out.shape == (E, d_e)
    assert jnp.allclose(out, ref_mixed, atol=2e-4, rtol=2e-4), \
        "mismatch vs mixed-precision reference"
    assert jnp.allclose(out, ref_f32, atol=1e-1, rtol=1e-1), \
        "mismatch vs f32 reference"

    # Small-tile path (more grid steps + a different masked tail length).
    out_mt = jax.block_until_ready(
        edge_processor(h_i, h_j, edge_attr, params, tile_e=16))
    assert out_mt.shape == (E, d_e)
    assert jnp.allclose(out_mt, ref_mixed, atol=2e-4, rtol=2e-4), \
        "multi-tile mismatch vs mixed-precision reference"

    print("KERNEL_OK")
</pallas_src>

<mosaic_0001>
module attributes {stable_mosaic.version = 11 : i64} {
  func.func @edge_processor_kernel(%arg0: i32, %arg1: memref<64x32xf32, #tpu.memory_space<vmem>>, %arg2: memref<64x32xf32, #tpu.memory_space<vmem>>, %arg3: memref<64x32xf32, #tpu.memory_space<vmem>>, %arg4: memref<32x64xbf16, #tpu.memory_space<vmem>>, %arg5: memref<32x64xbf16, #tpu.memory_space<vmem>>, %arg6: memref<32x64xbf16, #tpu.memory_space<vmem>>, %arg7: memref<1x64xf32, #tpu.memory_space<vmem>>, %arg8: memref<64x32xbf16, #tpu.memory_space<vmem>>, %arg9: memref<1x32xf32, #tpu.memory_space<vmem>>, %arg10: memref<1x32xf32, #tpu.memory_space<vmem>>, %arg11: memref<1x32xf32, #tpu.memory_space<vmem>>, %arg12: memref<64x32xf32, #tpu.memory_space<vmem>>) attributes {dimension_semantics = [#tpu.dimension_semantics<parallel>], iteration_bounds = array<i64: 4>, scalar_prefetch = 0 : i64, scratch_operands = 0 : i64, tpu.core_type = #tpu.core_type<tc>, window_params = [{transform_indices = @transform_0, window_bounds = array<i64: 64, 32>}, {transform_indices = @transform_1, window_bounds = array<i64: 64, 32>}, {transform_indices = @transform_2, window_bounds = array<i64: 64, 32>}, {pipeline_mode = #tpu.pipeline_mode<synchronous>, transform_indices = @transform_3, window_bounds = array<i64: 32, 64>}, {pipeline_mode = #tpu.pipeline_mode<synchronous>, transform_indices = @transform_4, window_bounds = array<i64: 32, 64>}, {pipeline_mode = #tpu.pipeline_mode<synchronous>, transform_indices = @transform_5, window_bounds = array<i64: 32, 64>}, {pipeline_mode = #tpu.pipeline_mode<synchronous>, transform_indices = @transform_6, window_bounds = array<i64: 1, 64>}, {pipeline_mode = #tpu.pipeline_mode<synchronous>, transform_indices = @transform_7, window_bounds = array<i64: 64, 32>}, {pipeline_mode = #tpu.pipeline_mode<synchronous>, transform_indices = @transform_8, window_bounds = array<i64: 1, 32>}, {pipeline_mode = #tpu.pipeline_mode<synchronous>, transform_indices = @transform_9, window_bounds = array<i64: 1, 32>}, {pipeline_mode = #tpu.pipeline_mode<synchronous>, transform_indices = @transform_10, window_bounds = array<i64: 1, 32>}, {transform_indices = @transform_11, window_bounds = array<i64: 64, 32>}]} {
    %c0 = arith.constant 0 : index
    %c0_0 = arith.constant 0 : index
    %0 = vector.load %arg1[%c0, %c0_0] : memref<64x32xf32, #tpu.memory_space<vmem>>, vector<64x32xf32>
    %1 = arith.truncf %0 : vector<64x32xf32> to vector<64x32xbf16>
    %c0_1 = arith.constant 0 : index
    %c0_2 = arith.constant 0 : index
    %2 = vector.load %arg2[%c0_1, %c0_2] : memref<64x32xf32, #tpu.memory_space<vmem>>, vector<64x32xf32>
    %3 = arith.truncf %2 : vector<64x32xf32> to vector<64x32xbf16>
    %c0_3 = arith.constant 0 : index
    %c0_4 = arith.constant 0 : index
    %4 = vector.load %arg3[%c0_3, %c0_4] : memref<64x32xf32, #tpu.memory_space<vmem>>, vector<64x32xf32>
    %5 = arith.truncf %4 : vector<64x32xf32> to vector<64x32xbf16>
    %c0_5 = arith.constant 0 : index
    %c0_6 = arith.constant 0 : index
    %6 = vector.load %arg4[%c0_5, %c0_6] : memref<32x64xbf16, #tpu.memory_space<vmem>>, vector<32x64xbf16>
    %cst = arith.constant dense<0.000000e+00> : vector<64x64xf32>
    %7 = tpu.matmul %1, %6, %cst {dimension_numbers = #tpu.dot_dimension_numbers<[1], [0], [0], [1], [0, 0, 1, 1], [], []>} : vector<64x32xbf16>, vector<32x64xbf16>, vector<64x64xf32> -> vector<64x64xf32>
    %c0_7 = arith.constant 0 : index
    %c0_8 = arith.constant 0 : index
    %8 = vector.load %arg5[%c0_7, %c0_8] : memref<32x64xbf16, #tpu.memory_space<vmem>>, vector<32x64xbf16>
    %cst_9 = arith.constant dense<0.000000e+00> : vector<64x64xf32>
    %9 = tpu.matmul %3, %8, %cst_9 {dimension_numbers = #tpu.dot_dimension_numbers<[1], [0], [0], [1], [0, 0, 1, 1], [], []>} : vector<64x32xbf16>, vector<32x64xbf16>, vector<64x64xf32> -> vector<64x64xf32>
    %10 = arith.addf %7, %9 : vector<64x64xf32>
    %c0_10 = arith.constant 0 : index
    %c0_11 = arith.constant 0 : index
    %11 = vector.load %arg6[%c0_10, %c0_11] : memref<32x64xbf16, #tpu.memory_space<vmem>>, vector<32x64xbf16>
    %cst_12 = arith.constant dense<0.000000e+00> : vector<64x64xf32>
    %12 = tpu.matmul %5, %11, %cst_12 {dimension_numbers = #tpu.dot_dimension_numbers<[1], [0], [0], [1], [0, 0, 1, 1], [], []>} : vector<64x32xbf16>, vector<32x64xbf16>, vector<64x64xf32> -> vector<64x64xf32>
    %13 = arith.addf %10, %12 : vector<64x64xf32>
    %c0_13 = arith.constant 0 : index
    %c0_14 = arith.constant 0 : index
    %14 = vector.load %arg7[%c0_13, %c0_14] : memref<1x64xf32, #tpu.memory_space<vmem>>, vector<1x64xf32>
    %15 = vector.broadcast %14 : vector<1x64xf32> to vector<64x64xf32>
    %16 = arith.addf %13, %15 : vector<64x64xf32>
    %cst_15 = arith.constant 0.000000e+00 : f32
    %17 = vector.broadcast %cst_15 : f32 to vector<64x64xf32>
    %18 = arith.maximumf %16, %17 : vector<64x64xf32>
    %19 = arith.truncf %18 : vector<64x64xf32> to vector<64x64xbf16>
    %c0_16 = arith.constant 0 : index
    %c0_17 = arith.constant 0 : index
    %20 = vector.load %arg8[%c0_16, %c0_17] : memref<64x32xbf16, #tpu.memory_space<vmem>>, vector<64x32xbf16>
    %cst_18 = arith.constant dense<0.000000e+00> : vector<64x32xf32>
    %21 = tpu.matmul %19, %20, %cst_18 {dimension_numbers = #tpu.dot_dimension_numbers<[1], [0], [0], [1], [0, 0, 1, 1], [], []>} : vector<64x64xbf16>, vector<64x32xbf16>, vector<64x32xf32> -> vector<64x32xf32>
    %c0_19 = arith.constant 0 : index
    %c0_20 = arith.constant 0 : index
    %22 = vector.load %arg9[%c0_19, %c0_20] : memref<1x32xf32, #tpu.memory_space<vmem>>, vector<1x32xf32>
    %23 = vector.broadcast %22 : vector<1x32xf32> to vector<64x32xf32>
    %24 = arith.addf %21, %23 : vector<64x32xf32>
    %cst_21 = arith.constant dense<0.000000e+00> : vector<64xf32>
    %25 = vector.multi_reduction <add>, %24, %cst_21 [1] : vector<64x32xf32> to vector<64xf32>
    %26 = vector.shape_cast %25 : vector<64xf32> to vector<64x1xf32>
    %cst_22 = arith.constant 3.200000e+01 : f32
    %27 = vector.broadcast %cst_22 : f32 to vector<64x1xf32>
    %28 = arith.divf %26, %27 : vector<64x1xf32>
    %29 = vector.broadcast %28 : vector<64x1xf32> to vector<64x32xf32>
    %30 = arith.subf %24, %29 : vector<64x32xf32>
    %31 = arith.mulf %30, %30 : vector<64x32xf32>
    %cst_23 = arith.constant dense<0.000000e+00> : vector<64xf32>
    %32 = vector.multi_reduction <add>, %31, %cst_23 [1] : vector<64x32xf32> to vector<64xf32>
    %33 = vector.shape_cast %32 : vector<64xf32> to vector<64x1xf32>
    %cst_24 = arith.constant 3.200000e+01 : f32
    %34 = vector.broadcast %cst_24 : f32 to vector<64x1xf32>
    %35 = arith.divf %33, %34 : vector<64x1xf32>
    %cst_25 = arith.constant 9.99999974E-6 : f32
    %36 = vector.broadcast %cst_25 : f32 to vector<64x1xf32>
    %37 = arith.addf %35, %36 : vector<64x1xf32>
    %38 = math.rsqrt %37 : vector<64x1xf32>
    %39 = vector.broadcast %38 : vector<64x1xf32> to vector<64x32xf32>
    %40 = arith.mulf %30, %39 : vector<64x32xf32>
    %c0_26 = arith.constant 0 : index
    %c0_27 = arith.constant 0 : index
    %41 = vector.load %arg10[%c0_26, %c0_27] : memref<1x32xf32, #tpu.memory_space<vmem>>, vector<1x32xf32>
    %42 = vector.broadcast %41 : vector<1x32xf32> to vector<64x32xf32>
    %43 = arith.mulf %40, %42 : vector<64x32xf32>
    %c0_28 = arith.constant 0 : index
    %c0_29 = arith.constant 0 : index
    %44 = vector.load %arg11[%c0_28, %c0_29] : memref<1x32xf32, #tpu.memory_space<vmem>>, vector<1x32xf32>
    %45 = vector.broadcast %44 : vector<1x32xf32> to vector<64x32xf32>
    %46 = arith.addf %43, %45 : vector<64x32xf32>
    %47 = arith.addf %4, %46 : vector<64x32xf32>
    %c0_30 = arith.constant 0 : index
    %c0_31 = arith.constant 0 : index
    %48 = vector.load %arg12[%c0_30, %c0_31] : memref<64x32xf32, #tpu.memory_space<vmem>>, vector<64x32xf32>
    tpu.vector_store %arg12[%c0_30, %c0_31], %47 {strides = array<i32>} : memref<64x32xf32, #tpu.memory_space<vmem>>, vector<64x32xf32>,
    return
  }
  func.func @transform_0(%arg0: i32) -> (i32, i32) {
    %c0_i32 = arith.constant 0 : i32
    %c0_i32_0 = arith.constant 0 : i32
    return %arg0, %c0_i32 : i32, i32
  }
  func.func @transform_1(%arg0: i32) -> (i32, i32) {
    %c0_i32 = arith.constant 0 : i32
    %c0_i32_0 = arith.constant 0 : i32
    return %arg0, %c0_i32 : i32, i32
  }
  func.func @transform_2(%arg0: i32) -> (i32, i32) {
    %c0_i32 = arith.constant 0 : i32
    %c0_i32_0 = arith.constant 0 : i32
    return %arg0, %c0_i32 : i32, i32
  }
  func.func @transform_3(%arg0: i32) -> (i32, i32) {
    %c0_i32 = arith.constant 0 : i32
    %c0_i32_0 = arith.constant 0 : i32
    %c0_i32_1 = arith.constant 0 : i32
    return %c0_i32, %c0_i32_0 : i32, i32
  }
  func.func @transform_4(%arg0: i32) -> (i32, i32) {
    %c0_i32 = arith.constant 0 : i32
    %c0_i32_0 = arith.constant 0 : i32
    %c0_i32_1 = arith.constant 0 : i32
    return %c0_i32, %c0_i32_0 : i32, i32
  }
  func.func @transform_5(%arg0: i32) -> (i32, i32) {
    %c0_i32 = arith.constant 0 : i32
    %c0_i32_0 = arith.constant 0 : i32
    %c0_i32_1 = arith.constant 0 : i32
    return %c0_i32, %c0_i32_0 : i32, i32
  }
  func.func @transform_6(%arg0: i32) -> (i32, i32) {
    %c0_i32 = arith.constant 0 : i32
    %c0_i32_0 = arith.constant 0 : i32
    %c0_i32_1 = arith.constant 0 : i32
    return %c0_i32, %c0_i32_0 : i32, i32
  }
  func.func @transform_7(%arg0: i32) -> (i32, i32) {
    %c0_i32 = arith.constant 0 : i32
    %c0_i32_0 = arith.constant 0 : i32
    %c0_i32_1 = arith.constant 0 : i32
    return %c0_i32, %c0_i32_0 : i32, i32
  }
  func.func @transform_8(%arg0: i32) -> (i32, i32) {
    %c0_i32 = arith.constant 0 : i32
    %c0_i32_0 = arith.constant 0 : i32
    %c0_i32_1 = arith.constant 0 : i32
    return %c0_i32, %c0_i32_0 : i32, i32
  }
  func.func @transform_9(%arg0: i32) -> (i32, i32) {
    %c0_i32 = arith.constant 0 : i32
    %c0_i32_0 = arith.constant 0 : i32
    %c0_i32_1 = arith.constant 0 : i32
    return %c0_i32, %c0_i32_0 : i32, i32
  }
  func.func @transform_10(%arg0: i32) -> (i32, i32) {
    %c0_i32 = arith.constant 0 : i32
    %c0_i32_0 = arith.constant 0 : i32
    %c0_i32_1 = arith.constant 0 : i32
    return %c0_i32, %c0_i32_0 : i32, i32
  }
  func.func @transform_11(%arg0: i32) -> (i32, i32) {
    %c0_i32 = arith.constant 0 : i32
    %c0_i32_0 = arith.constant 0 : i32
    return %arg0, %c0_i32 : i32, i32
  }
}

</mosaic_0001>

<llo_original>
// kernel: tpu_custom_call.1
$region0: #{tpu_custom_call.1}
  #allocation0 [shape = 'u32[]', space=smem, size = 0x4, offset = 0x4, fixed_abs, tag = 'smem constant byte address 0x4 - core index']
  #allocation1 [shape = 'u32[72,128]{1,0:T(1,128)}', space=vmem, size = 0x9000, scoped, tag = 'internal scratch']
  %s0 = inlined_call_operand.vmem [shape: f32[200,32], index: 0, kind: input, shape index: {}]
  %s1 = inlined_call_operand.vmem [shape: f32[200,32], index: 1, kind: input, shape index: {}]
  %s2 = inlined_call_operand.vmem [shape: f32[200,32], index: 2, kind: input, shape index: {}]
  %s3 = inlined_call_operand.vmem [shape: bf16[32,64], index: 3, kind: input, shape index: {}]
  %s4 = inlined_call_operand.vmem [shape: bf16[32,64], index: 4, kind: input, shape index: {}]
  %s5 = inlined_call_operand.vmem [shape: bf16[32,64], index: 5, kind: input, shape index: {}]
  %s6 = inlined_call_operand.vmem [shape: f32[1,64], index: 6, kind: input, shape index: {}]
  %s7 = inlined_call_operand.vmem [shape: bf16[64,32], index: 7, kind: input, shape index: {}]
  %s8 = inlined_call_operand.vmem [shape: f32[1,32], index: 8, kind: input, shape index: {}]
  %s9 = inlined_call_operand.vmem [shape: f32[1,32], index: 9, kind: input, shape index: {}]
  %s10 = inlined_call_operand.vmem [shape: f32[1,32], index: 10, kind: input, shape index: {}]
  %s11 = inlined_call_operand.vmem [shape: f32[200,32], index: 11, kind: output, shape index: {}]
  %s12 = sld [smem:[#allocation0]]
  $region125: #{tpu_custom_call.1} parent=0
    _
  %s14 = ssub.s32 1, %s12
  %s15 = scalar_select 0, %s14, %s12
  $region1: #{tpu_custom_call.1} parent=0
    #allocation2 [shape = 'u8[65536]{0}', space=vmem, size = 0x10000, scoped, tag = 'output window, operand 0']
    loop: start=0, step=1, limit=6
    $region2: #{tpu_custom_call.1} parent=1 // loop_pre_header
      _
    $region3: #{tpu_custom_call.1} parent=1 // loop_header
      %s17 = sphi 0, %s21
      %p18 = scmp.ge.s32.totalorder %s17, 6
      %s27 = sphi 0, %s29
      %s30 = sphi 0, %s27
      %s31 = sphi 0, %s30
      %s47 = sphi 0, %s31
      %s53 = sphi 0, %s55
      %s56 = sphi 0, %s53
      %s57 = sphi 0, %s56
      %s73 = sphi 0, %s57
      %s79 = sphi 0, %s81
      %s82 = sphi 0, %s79
      %s83 = sphi 0, %s82
      %s99 = sphi 0, %s83
      %s103 = sphi 0, %s103
      %s105 = sphi 0, %s103
      %s106 = sphi 0, %s105
      %s120 = sphi 0, %s106
      %s124 = sphi 0, %s124
      %s126 = sphi 0, %s124
      %s127 = sphi 0, %s126
      %s141 = sphi 0, %s127
      %s145 = sphi 0, %s145
      %s147 = sphi 0, %s145
      %s148 = sphi 0, %s147
      %s162 = sphi 0, %s148
      %s166 = sphi 0, %s166
      %s168 = sphi 0, %s166
      %s169 = sphi 0, %s168
      %s183 = sphi 0, %s169
      %s187 = sphi 0, %s187
      %s189 = sphi 0, %s187
      %s190 = sphi 0, %s189
      %s204 = sphi 0, %s190
      %s208 = sphi 0, %s208
      %s210 = sphi 0, %s208
      %s211 = sphi 0, %s210
      %s225 = sphi 0, %s211
      %s229 = sphi 0, %s229
      %s231 = sphi 0, %s229
      %s232 = sphi 0, %s231
      %s246 = sphi 0, %s232
      %s250 = sphi 0, %s250
      %s252 = sphi 0, %s250
      %s253 = sphi 0, %s252
      %s267 = sphi 0, %s253
      %s273 = sphi 0, %s275
      %s276 = sphi 0, %s273
      %s277 = sphi 0, %s276
      %s293 = sphi 0, %s277
    $region4: #{tpu_custom_call.1} parent=1 // loop_header_branch
      %20 = sbr.rel (%p18) target = $region8
    $region5: #{tpu_custom_call.1} parent=1 // loop_body
      %s22 = ssub.s32 %s17, 1
      %s23 = ssub.s32 %s17, 2
      %s24 = sadd.s32 %s17, 1
      %s25 = ssub.s32 %s17, %s24
      %p26 = scmp.eq.s32.totalorder %s25, 0
      %s28 = sadd.s32 %s27, 1
      %s29 = scalar_select %p26, %s27, %s28
      %p32 = pneg %p26
      %p33 = scmp.eq.s32.totalorder %s17, 3
      %p34 = por %p32, %p33
      %p35 = scmp.ne.s32.totalorder %s27, %s30
      %p36 = scmp.eq.s32.totalorder %s17, 0
      %p37 = por %p35, %p36
      %p38 = scmp.ne.s32.totalorder %s27, %s30
      %p39 = scmp.eq.s32.totalorder %s22, 3
      %p40 = por %p38, %p39
      %p41 = scmp.ne.s32.totalorder %s30, %s31
      %p42 = scmp.eq.s32.totalorder %s22, 0
      %p43 = por %p41, %p42
      %p44 = scmp.ne.s32.totalorder %s30, %s31
      %p45 = scmp.eq.s32.totalorder %s23, 3
      %p46 = por %p44, %p45
      %p48 = scmp.ne.s32.totalorder %s31, %s47
      %p49 = scmp.eq.s32.totalorder %s23, 0
      %p50 = por %p48, %p49
      %s51 = ssub.s32 %s17, %s24
      %p52 = scmp.eq.s32.totalorder %s51, 0
      %s54 = sadd.s32 %s53, 1
      %s55 = scalar_select %p52, %s53, %s54
      %p58 = pneg %p52
      %p59 = scmp.eq.s32.totalorder %s17, 3
      %p60 = por %p58, %p59
      %p61 = scmp.ne.s32.totalorder %s53, %s56
      %p62 = scmp.eq.s32.totalorder %s17, 0
      %p63 = por %p61, %p62
      %p64 = scmp.ne.s32.totalorder %s53, %s56
      %p65 = scmp.eq.s32.totalorder %s22, 3
      %p66 = por %p64, %p65
      %p67 = scmp.ne.s32.totalorder %s56, %s57
      %p68 = scmp.eq.s32.totalorder %s22, 0
      %p69 = por %p67, %p68
      %p70 = scmp.ne.s32.totalorder %s56, %s57
      %p71 = scmp.eq.s32.totalorder %s23, 3
      %p72 = por %p70, %p71
      %p74 = scmp.ne.s32.totalorder %s57, %s73
      %p75 = scmp.eq.s32.totalorder %s23, 0
      %p76 = por %p74, %p75
      %s77 = ssub.s32 %s17, %s24
      %p78 = scmp.eq.s32.totalorder %s77, 0
      %s80 = sadd.s32 %s79, 1
      %s81 = scalar_select %p78, %s79, %s80
      %p84 = pneg %p78
      %p85 = scmp.eq.s32.totalorder %s17, 3
      %p86 = por %p84, %p85
      %p87 = scmp.ne.s32.totalorder %s79, %s82
      %p88 = scmp.eq.s32.totalorder %s17, 0
      %p89 = por %p87, %p88
      %p90 = scmp.ne.s32.totalorder %s79, %s82
      %p91 = scmp.eq.s32.totalorder %s22, 3
      %p92 = por %p90, %p91
      %p93 = scmp.ne.s32.totalorder %s82, %s83
      %p94 = scmp.eq.s32.totalorder %s22, 0
      %p95 = por %p93, %p94
      %p96 = scmp.ne.s32.totalorder %s82, %s83
      %p97 = scmp.eq.s32.totalorder %s23, 3
      %p98 = por %p96, %p97
      %p100 = scmp.ne.s32.totalorder %s83, %s99
      %p101 = scmp.eq.s32.totalorder %s23, 0
      %p102 = por %p100, %p101
      %s104 = sadd.s32 %s103, 1
      %p107 = scmp.eq.s32.totalorder %s17, 3
      %p108 = scmp.ne.s32.totalorder %s103, %s105
      %p109 = scmp.eq.s32.totalorder %s17, 0
      %p110 = por %p108, %p109
      %p111 = scmp.ne.s32.totalorder %s103, %s105
      %p112 = scmp.eq.s32.totalorder %s22, 3
      %p113 = por %p111, %p112
      %p114 = scmp.ne.s32.totalorder %s105, %s106
      %p115 = scmp.eq.s32.totalorder %s22, 0
      %p116 = por %p114, %p115
      %p117 = scmp.ne.s32.totalorder %s105, %s106
      %p118 = scmp.eq.s32.totalorder %s23, 3
      %p119 = por %p117, %p118
      %p121 = scmp.ne.s32.totalorder %s106, %s120
      %p122 = scmp.eq.s32.totalorder %s23, 0
      %p123 = por %p121, %p122
      %s125 = sadd.s32 %s124, 1
      %p128 = scmp.eq.s32.totalorder %s17, 3
      %p129 = scmp.ne.s32.totalorder %s124, %s126
      %p130 = scmp.eq.s32.totalorder %s17, 0
      %p131 = por %p129, %p130
      %p132 = scmp.ne.s32.totalorder %s124, %s126
      %p133 = scmp.eq.s32.totalorder %s22, 3
      %p134 = por %p132, %p133
      %p135 = scmp.ne.s32.totalorder %s126, %s127
      %p136 = scmp.eq.s32.totalorder %s22, 0
      %p137 = por %p135, %p136
      %p138 = scmp.ne.s32.totalorder %s126, %s127
      %p139 = scmp.eq.s32.totalorder %s23, 3
      %p140 = por %p138, %p139
      %p142 = scmp.ne.s32.totalorder %s127, %s141
      %p143 = scmp.eq.s32.totalorder %s23, 0
      %p144 = por %p142, %p143
      %s146 = sadd.s32 %s145, 1
      %p149 = scmp.eq.s32.totalorder %s17, 3
      %p150 = scmp.ne.s32.totalorder %s145, %s147
      %p151 = scmp.eq.s32.totalorder %s17, 0
      %p152 = por %p150, %p151
      %p153 = scmp.ne.s32.totalorder %s145, %s147
      %p154 = scmp.eq.s32.totalorder %s22, 3
      %p155 = por %p153, %p154
      %p156 = scmp.ne.s32.totalorder %s147, %s148
      %p157 = scmp.eq.s32.totalorder %s22, 0
      %p158 = por %p156, %p157
      %p159 = scmp.ne.s32.totalorder %s147, %s148
      %p160 = scmp.eq.s32.totalorder %s23, 3
      %p161 = por %p159, %p160
      %p163 = scmp.ne.s32.totalorder %s148, %s162
      %p164 = scmp.eq.s32.totalorder %s23, 0
      %p165 = por %p163, %p164
      %s167 = sadd.s32 %s166, 1
      %p170 = scmp.eq.s32.totalorder %s17, 3
      %p171 = scmp.ne.s32.totalorder %s166, %s168
      %p172 = scmp.eq.s32.totalorder %s17, 0
      %p173 = por %p171, %p172
      %p174 = scmp.ne.s32.totalorder %s166, %s168
      %p175 = scmp.eq.s32.totalorder %s22, 3
      %p176 = por %p174, %p175
      %p177 = scmp.ne.s32.totalorder %s168, %s169
      %p178 = scmp.eq.s32.totalorder %s22, 0
      %p179 = por %p177, %p178
      %p180 = scmp.ne.s32.totalorder %s168, %s169
      %p181 = scmp.eq.s32.totalorder %s23, 3
      %p182 = por %p180, %p181
      %p184 = scmp.ne.s32.totalorder %s169, %s183
      %p185 = scmp.eq.s32.totalorder %s23, 0
      %p186 = por %p184, %p185
      %s188 = sadd.s32 %s187, 1
      %p191 = scmp.eq.s32.totalorder %s17, 3
      %p192 = scmp.ne.s32.totalorder %s187, %s189
      %p193 = scmp.eq.s32.totalorder %s17, 0
      %p194 = por %p192, %p193
      %p195 = scmp.ne.s32.totalorder %s187, %s189
      %p196 = scmp.eq.s32.totalorder %s22, 3
      %p197 = por %p195, %p196
      %p198 = scmp.ne.s32.totalorder %s189, %s190
      %p199 = scmp.eq.s32.totalorder %s22, 0
      %p200 = por %p198, %p199
      %p201 = scmp.ne.s32.totalorder %s189, %s190
      %p202 = scmp.eq.s32.totalorder %s23, 3
      %p203 = por %p201, %p202
      %p205 = scmp.ne.s32.totalorder %s190, %s204
      %p206 = scmp.eq.s32.totalorder %s23, 0
      %p207 = por %p205, %p206
      %s209 = sadd.s32 %s208, 1
      %p212 = scmp.eq.s32.totalorder %s17, 3
      %p213 = scmp.ne.s32.totalorder %s208, %s210
      %p214 = scmp.eq.s32.totalorder %s17, 0
      %p215 = por %p213, %p214
      %p216 = scmp.ne.s32.totalorder %s208, %s210
      %p217 = scmp.eq.s32.totalorder %s22, 3
      %p218 = por %p216, %p217
      %p219 = scmp.ne.s32.totalorder %s210, %s211
      %p220 = scmp.eq.s32.totalorder %s22, 0
      %p221 = por %p219, %p220
      %p222 = scmp.ne.s32.totalorder %s210, %s211
      %p223 = scmp.eq.s32.totalorder %s23, 3
      %p224 = por %p222, %p223
      %p226 = scmp.ne.s32.totalorder %s211, %s225
      %p227 = scmp.eq.s32.totalorder %s23, 0
      %p228 = por %p226, %p227
      %s230 = sadd.s32 %s229, 1
      %p233 = scmp.eq.s32.totalorder %s17, 3
      %p234 = scmp.ne.s32.totalorder %s229, %s231
      %p235 = scmp.eq.s32.totalorder %s17, 0
      %p236 = por %p234, %p235
      %p237 = scmp.ne.s32.totalorder %s229, %s231
      %p238 = scmp.eq.s32.totalorder %s22, 3
      %p239 = por %p237, %p238
      %p240 = scmp.ne.s32.totalorder %s231, %s232
      %p241 = scmp.eq.s32.totalorder %s22, 0
      %p242 = por %p240, %p241
      %p243 = scmp.ne.s32.totalorder %s231, %s232
      %p244 = scmp.eq.s32.totalorder %s23, 3
      %p245 = por %p243, %p244
      %p247 = scmp.ne.s32.totalorder %s232, %s246
      %p248 = scmp.eq.s32.totalorder %s23, 0
      %p249 = por %p247, %p248
      %s251 = sadd.s32 %s250, 1
      %p254 = scmp.eq.s32.totalorder %s17, 3
      %p255 = scmp.ne.s32.totalorder %s250, %s252
      %p256 = scmp.eq.s32.totalorder %s17, 0
      %p257 = por %p255, %p256
      %p258 = scmp.ne.s32.totalorder %s250, %s252
      %p259 = scmp.eq.s32.totalorder %s22, 3
      %p260 = por %p258, %p259
      %p261 = scmp.ne.s32.totalorder %s252, %s253
      %p262 = scmp.eq.s32.totalorder %s22, 0
      %p263 = por %p261, %p262
      %p264 = scmp.ne.s32.totalorder %s252, %s253
      %p265 = scmp.eq.s32.totalorder %s23, 3
      %p266 = por %p264, %p265
      %p268 = scmp.ne.s32.totalorder %s253, %s267
      %p269 = scmp.eq.s32.totalorder %s23, 0
      %p270 = por %p268, %p269
      %s271 = ssub.s32 %s17, %s24
      %p272 = scmp.eq.s32.totalorder %s271, 0
      %s274 = sadd.s32 %s273, 1
      %s275 = scalar_select %p272, %s273, %s274
      %p278 = pneg %p272
      %p279 = scmp.eq.s32.totalorder %s17, 3
      %p280 = por %p278, %p279
      %p281 = scmp.ne.s32.totalorder %s273, %s276
      %p282 = scmp.eq.s32.totalorder %s17, 0
      %p283 = por %p281, %p282
      %p284 = scmp.ne.s32.totalorder %s273, %s276
      %p285 = scmp.eq.s32.totalorder %s22, 3
      %p286 = por %p284, %p285
      %p287 = scmp.ne.s32.totalorder %s276, %s277
      %p288 = scmp.eq.s32.totalorder %s22, 0
      %p289 = por %p287, %p288
      %p290 = scmp.ne.s32.totalorder %s276, %s277
      %p291 = scmp.eq.s32.totalorder %s23, 3
      %p292 = por %p290, %p291
      %p294 = scmp.ne.s32.totalorder %s277, %s293
      %p295 = scmp.eq.s32.totalorder %s23, 0
      %p296 = por %p294, %p295
      %p297 = scmp.le.s32.totalorder 1, %s17
      %p298 = scmp.lt.s32.totalorder %s17, 5
      %p299 = pnand %p297, %p298
      %p300 = pneg %p299
      // Predicated region
      $region9: #{tpu_custom_call.1} parent=5 // pred_check
        _
      $region10: #{tpu_custom_call.1} parent=5 // pred_check_branch
        %302 = sbr.rel (%p299) target = $region12
      $region11: #{tpu_custom_call.1} parent=5 // pred_region
        %s303 = ssub.s32 %s17, 1
        // Predicated region
        $region13: #{tpu_custom_call.1} parent=11 // pred_check
          %p304 = pneg %p116
        $region14: #{tpu_custom_call.1} parent=11 // pred_check_branch
          %306 = sbr.rel (%p304) target = $region16
        $region15: #{tpu_custom_call.1} parent=11 // pred_region
          _
        $region16: #{tpu_custom_call.1} parent=11 // pred_fallthru
          _
        // Predicated region
        $region17: #{tpu_custom_call.1} parent=11 // pred_check
          %p307 = pneg %p137
        $region18: #{tpu_custom_call.1} parent=11 // pred_check_branch
          %309 = sbr.rel (%p307) target = $region20
        $region19: #{tpu_custom_call.1} parent=11 // pred_region
          _
        $region20: #{tpu_custom_call.1} parent=11 // pred_fallthru
          _
        // Predicated region
        $region21: #{tpu_custom_call.1} parent=11 // pred_check
          %p310 = pneg %p158
        $region22: #{tpu_custom_call.1} parent=11 // pred_check_branch
          %312 = sbr.rel (%p310) target = $region24
        $region23: #{tpu_custom_call.1} parent=11 // pred_region
          _
        $region24: #{tpu_custom_call.1} parent=11 // pred_fallthru
          _
        // Predicated region
        $region25: #{tpu_custom_call.1} parent=11 // pred_check
          %p313 = pneg %p179
        $region26: #{tpu_custom_call.1} parent=11 // pred_check_branch
          %315 = sbr.rel (%p313) target = $region28
        $region27: #{tpu_custom_call.1} parent=11 // pred_region
          _
        $region28: #{tpu_custom_call.1} parent=11 // pred_fallthru
          _
        // Predicated region
        $region29: #{tpu_custom_call.1} parent=11 // pred_check
          %p316 = pneg %p200
        $region30: #{tpu_custom_call.1} parent=11 // pred_check_branch
          %318 = sbr.rel (%p316) target = $region32
        $region31: #{tpu_custom_call.1} parent=11 // pred_region
          _
        $region32: #{tpu_custom_call.1} parent=11 // pred_fallthru
          _
        // Predicated region
        $region33: #{tpu_custom_call.1} parent=11 // pred_check
          %p319 = pneg %p221
        $region34: #{tpu_custom_call.1} parent=11 // pred_check_branch
          %321 = sbr.rel (%p319) target = $region36
        $region35: #{tpu_custom_call.1} parent=11 // pred_region
          _
        $region36: #{tpu_custom_call.1} parent=11 // pred_fallthru
          _
        // Predicated region
        $region37: #{tpu_custom_call.1} parent=11 // pred_check
          %p322 = pneg %p242
        $region38: #{tpu_custom_call.1} parent=11 // pred_check_branch
          %324 = sbr.rel (%p322) target = $region40
        $region39: #{tpu_custom_call.1} parent=11 // pred_region
          _
        $region40: #{tpu_custom_call.1} parent=11 // pred_fallthru
          _
        // Predicated region
        $region41: #{tpu_custom_call.1} parent=11 // pred_check
          %p325 = pneg %p263
        $region42: #{tpu_custom_call.1} parent=11 // pred_check_branch
          %327 = sbr.rel (%p325) target = $region44
        $region43: #{tpu_custom_call.1} parent=11 // pred_region
          _
        $region44: #{tpu_custom_call.1} parent=11 // pred_fallthru
          _
      $region12: #{tpu_custom_call.1} parent=5 // pred_fallthru
        _
      %p328 = scmp.lt.s32.totalorder %s17, 4
      // Predicated region
      $region45: #{tpu_custom_call.1} parent=5 // pred_check
        %p329 = pneg %p328
      $region46: #{tpu_custom_call.1} parent=5 // pred_check_branch
        %331 = sbr.rel (%p329) target = $region48
      $region47: #{tpu_custom_call.1} parent=5 // pred_region
        // Predicated region
        $region49: #{tpu_custom_call.1} parent=47 // pred_check
          %p332 = pneg %p37
        $region50: #{tpu_custom_call.1} parent=47 // pred_check_branch
          %334 = sbr.rel (%p332) target = $region52
        $region51: #{tpu_custom_call.1} parent=47 // pred_region
          %s335 = smul.u32 8, %s17
          %s336 = ssub.s32 25, %s335
          %p337 = scmp.lt.s32.totalorder %s336, 8
          %s338 = scalar_select %p337, %s336, 8
          %s339 = smul.u32 8, %s338
          %p340 = scmp.lt.s32.totalorder %s335, 24
          %s341 = scalar_select %p340, %s335, 24
          %s342 = smul.addr %s341, 8
          %s343 = scalar_lea.vmem %s0, %s342
          %s344 = smul.u32 8, %s17
          %s345 = ssub.s32 25, %s344
          %p346 = scmp.lt.s32.totalorder %s345, 8
          %s347 = scalar_select %p346, %s345, 8
          %s348 = smul.u32 8, %s347
        $region52: #{tpu_custom_call.1} parent=47 // pred_fallthru
          _
        // Predicated region
        $region53: #{tpu_custom_call.1} parent=47 // pred_check
          %p349 = pneg %p63
        $region54: #{tpu_custom_call.1} parent=47 // pred_check_branch
          %351 = sbr.rel (%p349) target = $region56
        $region55: #{tpu_custom_call.1} parent=47 // pred_region
          %s352 = smul.u32 8, %s17
          %s353 = ssub.s32 25, %s352
          %p354 = scmp.lt.s32.totalorder %s353, 8
          %s355 = scalar_select %p354, %s353, 8
          %s356 = smul.u32 8, %s355
          %p357 = scmp.lt.s32.totalorder %s352, 24
          %s358 = scalar_select %p357, %s352, 24
          %s359 = smul.addr %s358, 8
          %s360 = scalar_lea.vmem %s1, %s359
          %s361 = smul.u32 8, %s17
          %s362 = ssub.s32 25, %s361
          %p363 = scmp.lt.s32.totalorder %s362, 8
          %s364 = scalar_select %p363, %s362, 8
          %s365 = smul.u32 8, %s364
        $region56: #{tpu_custom_call.1} parent=47 // pred_fallthru
          _
        // Predicated region
        $region57: #{tpu_custom_call.1} parent=47 // pred_check
          %p366 = pneg %p89
        $region58: #{tpu_custom_call.1} parent=47 // pred_check_branch
          %368 = sbr.rel (%p366) target = $region60
        $region59: #{tpu_custom_call.1} parent=47 // pred_region
          %s369 = smul.u32 8, %s17
          %s370 = ssub.s32 25, %s369
          %p371 = scmp.lt.s32.totalorder %s370, 8
          %s372 = scalar_select %p371, %s370, 8
          %s373 = smul.u32 8, %s372
          %p374 = scmp.lt.s32.totalorder %s369, 24
          %s375 = scalar_select %p374, %s369, 24
          %s376 = smul.addr %s375, 8
          %s377 = scalar_lea.vmem %s2, %s376
          %s378 = smul.u32 8, %s17
          %s379 = ssub.s32 25, %s378
          %p380 = scmp.lt.s32.totalorder %s379, 8
          %s381 = scalar_select %p380, %s379, 8
          %s382 = smul.u32 8, %s381
        $region60: #{tpu_custom_call.1} parent=47 // pred_fallthru
          _
      $region48: #{tpu_custom_call.1} parent=5 // pred_fallthru
        _
      %p383 = scmp.le.s32.totalorder 1, %s17
      %p384 = scmp.lt.s32.totalorder %s17, 5
      %p385 = pnand %p383, %p384
      %p386 = pneg %p385
      // Predicated region
      $region61: #{tpu_custom_call.1} parent=5 // pred_check
        _
      $region62: #{tpu_custom_call.1} parent=5 // pred_check_branch
        %388 = sbr.rel (%p385) target = $region64
      $region63: #{tpu_custom_call.1} parent=5 // pred_region
        %s389 = ssub.s32 %s17, 1
        %s390 = smul.u32 8, %s22
        %s391 = ssub.s32 25, %s390
        %p392 = scmp.lt.s32.totalorder %s391, 8
        %s393 = scalar_select %p392, %s391, 8
        %s394 = smul.u32 8, %s393
        %p395 = scmp.lt.s32.totalorder %s390, 24
        %s396 = scalar_select %p395, %s390, 24
        %s397 = smul.addr %s396, 8
        %s398 = scalar_lea.vmem %s0, %s397
        %p399 = pneg %p43
        %p400 = pneg %p40
        %s401 = smul.u32 8, %s22
        %s402 = ssub.s32 25, %s401
        %p403 = scmp.lt.s32.totalorder %s402, 8
        %s404 = scalar_select %p403, %s402, 8
        %s405 = smul.u32 8, %s404
        %p406 = scmp.lt.s32.totalorder %s401, 24
        %s407 = scalar_select %p406, %s401, 24
        %s408 = smul.addr %s407, 8
        %s409 = scalar_lea.vmem %s1, %s408
        %p410 = pneg %p69
        %p411 = pneg %p66
        %s412 = smul.u32 8, %s22
        %s413 = ssub.s32 25, %s412
        %p414 = scmp.lt.s32.totalorder %s413, 8
        %s415 = scalar_select %p414, %s413, 8
        %s416 = smul.u32 8, %s415
        %p417 = scmp.lt.s32.totalorder %s412, 24
        %s418 = scalar_select %p417, %s412, 24
        %s419 = smul.addr %s418, 8
        %s420 = scalar_lea.vmem %s2, %s419
        %p421 = pneg %p95
        %p422 = pneg %p92
        %p423 = pneg %p116
        %p424 = pneg %p113
        %p425 = pneg %p137
        %p426 = pneg %p134
        %p427 = pneg %p158
        %p428 = pneg %p155
        %p429 = pneg %p179
        %p430 = pneg %p176
        %p431 = pneg %p200
        %p432 = pneg %p197
        %p433 = pneg %p221
        %p434 = pneg %p218
        %p435 = pneg %p242
        %p436 = pneg %p239
        %p437 = pneg %p263
        %p438 = pneg %p260
        %p439 = pneg %p289
        %p440 = pneg %p286
        %s441 = sand.u32 %s276, 1
        %s442 = sand.u32 %s276, 1
        %s443 = smul.addr %s442, 64
        %s444 = scalar_lea.vmem [#allocation2], %s443
        %s445 = smul.u32 8, %s22
        %s446 = ssub.s32 25, %s445
        %p447 = scmp.lt.s32.totalorder %s446, 8
        %s448 = scalar_select %p447, %s446, 8
        %s449 = smul.u32 8, %s448
        %p450 = scmp.lt.s32.totalorder %s445, 24
        %s451 = scalar_select %p450, %s445, 24
        %s452 = smul.addr %s451, 8
        %s453 = scalar_lea.vmem %s0, %s452
        %s454 = smul.u32 8, %s22
        %s455 = ssub.s32 25, %s454
        %p456 = scmp.lt.s32.totalorder %s455, 8
        %s457 = scalar_select %p456, %s455, 8
        %s458 = smul.u32 8, %s457
        %s459 = smul.u32 8, %s22
        %s460 = ssub.s32 25, %s459
        %p461 = scmp.lt.s32.totalorder %s460, 8
        %s462 = scalar_select %p461, %s460, 8
        %s463 = smul.u32 8, %s462
        %p464 = scmp.lt.s32.totalorder %s459, 24
        %s465 = scalar_select %p464, %s459, 24
        %s466 = smul.addr %s465, 8
        %s467 = scalar_lea.vmem %s1, %s466
        %s468 = smul.u32 8, %s22
        %s469 = ssub.s32 25, %s468
        %p470 = scmp.lt.s32.totalorder %s469, 8
        %s471 = scalar_select %p470, %s469, 8
        %s472 = smul.u32 8, %s471
        %s473 = smul.u32 8, %s22
        %s474 = ssub.s32 25, %s473
        %p475 = scmp.lt.s32.totalorder %s474, 8
        %s476 = scalar_select %p475, %s474, 8
        %s477 = smul.u32 8, %s476
        %p478 = scmp.lt.s32.totalorder %s473, 24
        %s479 = scalar_select %p478, %s473, 24
        %s480 = smul.addr %s479, 8
        %s481 = scalar_lea.vmem %s2, %s480
        %s482 = smul.u32 8, %s22
        %s483 = ssub.s32 25, %s482
        %p484 = scmp.lt.s32.totalorder %s483, 8
        %s485 = scalar_select %p484, %s483, 8
        %s486 = smul.u32 8, %s485
        %s487 = smul.u32 8, %s22
        %s488 = ssub.s32 25, %s487
        %p489 = scmp.lt.s32.totalorder %s488, 8
        %s490 = scalar_select %p489, %s488, 8
        %s491 = smul.u32 8, %s490
        %v493 = vld [vmem:[%s453] sm:$0xff]
        %v494 = vld [vmem:[%s453 + $0x8] sm:$0xff]
        %v495 = vld [vmem:[%s453 + $0x10] sm:$0xff]
        %v496 = vld [vmem:[%s453 + $0x18] sm:$0xff]
        %v497 = vld [vmem:[%s453 + $0x20] sm:$0xff]
        %v498 = vld [vmem:[%s453 + $0x28] sm:$0xff]
        %v499 = vld [vmem:[%s453 + $0x30] sm:$0xff]
        %v500 = vld [vmem:[%s453 + $0x38] sm:$0xff]
        %v501 = vpack.c.bf16 %v494, %v493
        %v502 = vpack.c.bf16 %v496, %v495
        %v503 = vpack.c.bf16 %v498, %v497
        %v504 = vpack.c.bf16 %v500, %v499
        %v505 = vld [vmem:[%s467] sm:$0xff]
        %v506 = vld [vmem:[%s467 + $0x8] sm:$0xff]
        %v507 = vld [vmem:[%s467 + $0x10] sm:$0xff]
        %v508 = vld [vmem:[%s467 + $0x18] sm:$0xff]
        %v509 = vld [vmem:[%s467 + $0x20] sm:$0xff]
        %v510 = vld [vmem:[%s467 + $0x28] sm:$0xff]
        %v511 = vld [vmem:[%s467 + $0x30] sm:$0xff]
        %v512 = vld [vmem:[%s467 + $0x38] sm:$0xff]
        %v513 = vpack.c.bf16 %v506, %v505
        %v514 = vpack.c.bf16 %v508, %v507
        %v515 = vpack.c.bf16 %v510, %v509
        %v516 = vpack.c.bf16 %v512, %v511
        %v517 = vld [vmem:[%s481] sm:$0xff]
        %v518 = vld [vmem:[%s481 + $0x8] sm:$0xff]
        %v519 = vld [vmem:[%s481 + $0x10] sm:$0xff]
        %v520 = vld [vmem:[%s481 + $0x18] sm:$0xff]
        %v521 = vld [vmem:[%s481 + $0x20] sm:$0xff]
        %v522 = vld [vmem:[%s481 + $0x28] sm:$0xff]
        %v523 = vld [vmem:[%s481 + $0x30] sm:$0xff]
        %v524 = vld [vmem:[%s481 + $0x38] sm:$0xff]
        %v525 = vpack.c.bf16 %v518, %v517
        %v526 = vpack.c.bf16 %v520, %v519
        %v527 = vpack.c.bf16 %v522, %v521
        %v528 = vpack.c.bf16 %v524, %v523
        %v529 = vld [vmem:[%s3] sm:$0xf]
        %v530 = vld [vmem:[%s3 + $0x4] sm:$0xf]
        %v531 = vld [vmem:[%s3 + $0x8] sm:$0xf]
        %v532 = vld [vmem:[%s3 + $0xc] sm:$0xf]
        %v533 = vld [vmem:[%s4] sm:$0xf]
        %v534 = vld [vmem:[%s4 + $0x4] sm:$0xf]
        %v535 = vld [vmem:[%s4 + $0x8] sm:$0xf]
        %v536 = vld [vmem:[%s4 + $0xc] sm:$0xf]
        %v541 = vunpack.c.l.b16 %v533
        %v542 = vunpack.c.l.b16 %v534
        %v543 = vunpack.c.l.b16 %v535
        %v544 = vunpack.c.l.b16 %v536
        %v545 = vpack.c.b16 %v542, %v541
        %v546 = vpack.c.b16 %v544, %v543
        %vm549 = vcmask 261120
        %v551 = vsel %vm549, %v513, 0
        %v554 = vsel %vm549, %v514, 0
        %v557 = vsel %vm549, %v515, 0
        %v560 = vsel %vm549, %v516, 0
        %562 = vmatpush.bf16.msra.mxu0 0
        %563 = vmatpush.bf16.msra.mxu0 0
        %564 = vmatpush.bf16.msra.mxu0 0
        %565 = vmatpush.bf16.msra.mxu0 0
        %566 = vmatpush.bf16.msra.mxu0 0
        %567 = vmatpush.bf16.msra.mxu0 0
        %568 = vmatpush.bf16.msra.mxu0 %v546
        %569 = vmatpush.bf16.msra.mxu0 %v545
        %570 = vmatmul.bf16.gmra.mxu0 %v551
        %v571 = vpop.f32.mrf.mxu0
        %v572 = vadd.f32 0.0, %v571
        %v573 = vpop.f32.mrf.mxu0
        %v574 = vadd.f32 0.0, %v573
        %575 = vmatmul.bf16.gmra.mxu0 %v554
        %v576 = vpop.f32.mrf.mxu0
        %v577 = vadd.f32 0.0, %v576
        %v578 = vpop.f32.mrf.mxu0
        %v579 = vadd.f32 0.0, %v578
        %580 = vmatmul.bf16.gmra.mxu0 %v557
        %v581 = vpop.f32.mrf.mxu0
        %v582 = vadd.f32 0.0, %v581
        %v583 = vpop.f32.mrf.mxu0
        %v584 = vadd.f32 0.0, %v583
        %585 = vmatmul.bf16.gmra.mxu0 %v560
        %v586 = vpop.f32.mrf.mxu0
        %v587 = vadd.f32 0.0, %v586
        %v588 = vpop.f32.mrf.mxu0
        %v589 = vadd.f32 0.0, %v588
        %590 = vdwg.mxu0
        %v595 = vunpack.c.l.b16 %v529
        %v596 = vunpack.c.l.b16 %v530
        %v597 = vunpack.c.l.b16 %v531
        %v598 = vunpack.c.l.b16 %v532
        %v599 = vpack.c.b16 %v596, %v595
        %v600 = vpack.c.b16 %v598, %v597
        %v604 = vsel %vm549, %v501, 0
        %v607 = vsel %vm549, %v502, 0
        %v610 = vsel %vm549, %v503, 0
        %v613 = vsel %vm549, %v504, 0
        %615 = vmatpush.bf16.msra.mxu0 0
        %616 = vmatpush.bf16.msra.mxu0 0
        %617 = vmatpush.bf16.msra.mxu0 0
        %618 = vmatpush.bf16.msra.mxu0 0
        %619 = vmatpush.bf16.msra.mxu0 0
        %620 = vmatpush.bf16.msra.mxu0 0
        %621 = vmatpush.bf16.msra.mxu0 %v600
        %622 = vmatpush.bf16.msra.mxu0 %v599
        %623 = vmatmul.bf16.gmra.mxu0 %v604
        %v624 = vpop.f32.mrf.mxu0
        %v625 = vadd.f32 %v572, %v624
        %v626 = vpop.f32.mrf.mxu0
        %v627 = vadd.f32 %v574, %v626
        %628 = vmatmul.bf16.gmra.mxu0 %v607
        %v629 = vpop.f32.mrf.mxu0
        %v630 = vadd.f32 %v577, %v629
        %v631 = vpop.f32.mrf.mxu0
        %v632 = vadd.f32 %v579, %v631
        %633 = vmatmul.bf16.gmra.mxu0 %v610
        %v634 = vpop.f32.mrf.mxu0
        %v635 = vadd.f32 %v582, %v634
        %v636 = vpop.f32.mrf.mxu0
        %v637 = vadd.f32 %v584, %v636
        %638 = vmatmul.bf16.gmra.mxu0 %v613
        %v639 = vpop.f32.mrf.mxu0
        %v640 = vadd.f32 %v587, %v639
        %v641 = vpop.f32.mrf.mxu0
        %v642 = vadd.f32 %v589, %v641
        %643 = vdwg.mxu0
        %v644 = vld [vmem:[%s5] sm:$0xf]
        %v645 = vld [vmem:[%s5 + $0x4] sm:$0xf]
        %v646 = vld [vmem:[%s5 + $0x8] sm:$0xf]
        %v647 = vld [vmem:[%s5 + $0xc] sm:$0xf]
        %v652 = vunpack.c.l.b16 %v644
        %v653 = vunpack.c.l.b16 %v645
        %v654 = vunpack.c.l.b16 %v646
        %v655 = vunpack.c.l.b16 %v647
        %v656 = vpack.c.b16 %v653, %v652
        %v657 = vpack.c.b16 %v655, %v654
        %v661 = vsel %vm549, %v525, 0
        %v664 = vsel %vm549, %v526, 0
        %v667 = vsel %vm549, %v527, 0
        %v670 = vsel %vm549, %v528, 0
        %672 = vmatpush.bf16.msra.mxu0 0
        %673 = vmatpush.bf16.msra.mxu0 0
        %674 = vmatpush.bf16.msra.mxu0 0
        %675 = vmatpush.bf16.msra.mxu0 0
        %676 = vmatpush.bf16.msra.mxu0 0
        %677 = vmatpush.bf16.msra.mxu0 0
        %678 = vmatpush.bf16.msra.mxu0 %v657
        %679 = vmatpush.bf16.msra.mxu0 %v656
        %680 = vmatmul.bf16.gmra.mxu0 %v661
        %v681 = vpop.f32.mrf.mxu0
        %v682 = vadd.f32 0.0, %v681
        %v683 = vpop.f32.mrf.mxu0
        %v684 = vadd.f32 0.0, %v683
        %685 = vmatmul.bf16.gmra.mxu0 %v664
        %v686 = vpop.f32.mrf.mxu0
        %v687 = vadd.f32 0.0, %v686
        %v688 = vpop.f32.mrf.mxu0
        %v689 = vadd.f32 0.0, %v688
        %690 = vmatmul.bf16.gmra.mxu0 %v667
        %v691 = vpop.f32.mrf.mxu0
        %v692 = vadd.f32 0.0, %v691
        %v693 = vpop.f32.mrf.mxu0
        %v694 = vadd.f32 0.0, %v693
        %695 = vmatmul.bf16.gmra.mxu0 %v670
        %v696 = vpop.f32.mrf.mxu0
        %v697 = vadd.f32 0.0, %v696
        %v698 = vpop.f32.mrf.mxu0
        %v699 = vadd.f32 0.0, %v698
        %700 = vdwg.mxu0
        %v701 = vadd.f32 %v625, %v682
        %v702 = vadd.f32 %v627, %v684
        %v703 = vadd.f32 %v630, %v687
        %v704 = vadd.f32 %v632, %v689
        %v705 = vadd.f32 %v635, %v692
        %v706 = vadd.f32 %v637, %v694
        %v707 = vadd.f32 %v640, %v697
        %v708 = vadd.f32 %v642, %v699
        %v709 = vld [vmem:[%s6] sm:$0x1]
        %v711 = vperm.slane %v709, 0
        %v713 = vadd.f32 %v701, %v711
        %v714 = vadd.f32 %v702, %v711
        %v715 = vadd.f32 %v703, %v711
        %v716 = vadd.f32 %v704, %v711
        %v717 = vadd.f32 %v705, %v711
        %v718 = vadd.f32 %v706, %v711
        %v719 = vadd.f32 %v707, %v711
        %v720 = vadd.f32 %v708, %v711
        %v721 = vmax.f32 %v713, 0.0
        %v722 = vmax.f32 %v714, 0.0
        %v723 = vmax.f32 %v715, 0.0
        %v724 = vmax.f32 %v716, 0.0
        %v725 = vmax.f32 %v717, 0.0
        %v726 = vmax.f32 %v718, 0.0
        %v727 = vmax.f32 %v719, 0.0
        %v728 = vmax.f32 %v720, 0.0
        %v729 = vpack.c.bf16 %v722, %v721
        %v730 = vpack.c.bf16 %v724, %v723
        %v731 = vpack.c.bf16 %v726, %v725
        %v732 = vpack.c.bf16 %v728, %v727
        %v733 = vld [vmem:[%s7] sm:$0xf]
        %v734 = vld [vmem:[%s7 + $0x4] sm:$0xf]
        %v735 = vld [vmem:[%s7 + $0x8] sm:$0xf]
        %v736 = vld [vmem:[%s7 + $0xc] sm:$0xf]
        %v737 = vld [vmem:[%s7 + $0x10] sm:$0xf]
        %v738 = vld [vmem:[%s7 + $0x14] sm:$0xf]
        %v739 = vld [vmem:[%s7 + $0x18] sm:$0xf]
        %v740 = vld [vmem:[%s7 + $0x1c] sm:$0xf]
        %v741 = vld [vmem:[%s8] sm:$0x1]
        %v743 = vperm.slane %v741, 0
        %v753 = vunpack.c.l.b16 %v733
        %v754 = vunpack.c.l.b16 %v734
        %v755 = vunpack.c.l.b16 %v735
        %v756 = vunpack.c.l.b16 %v736
        %v757 = vunpack.c.l.b16 %v737
        %v758 = vunpack.c.l.b16 %v738
        %v759 = vunpack.c.l.b16 %v739
        %v760 = vunpack.c.l.b16 %v740
        %v761 = vpack.c.b16 %v754, %v753
        %v762 = vpack.c.b16 %v756, %v755
        %v763 = vpack.c.b16 %v758, %v757
        %v764 = vpack.c.b16 %v760, %v759
        %vm769 = vcmask 523264
        %v771 = vsel %vm769, %v729, 0
        %v774 = vsel %vm769, %v730, 0
        %v777 = vsel %vm769, %v731, 0
        %v780 = vsel %vm769, %v732, 0
        %782 = vmatpush.bf16.msra.mxu0 0
        %783 = vmatpush.bf16.msra.mxu0 0
        %784 = vmatpush.bf16.msra.mxu0 0
        %785 = vmatpush.bf16.msra.mxu0 0
        %786 = vmatpush.bf16.msra.mxu0 %v764
        %787 = vmatpush.bf16.msra.mxu0 %v763
        %788 = vmatpush.bf16.msra.mxu0 %v762
        %789 = vmatpush.bf16.msra.mxu0 %v761
        %790 = vmatmul.bf16.gmra.mxu0 %v771
        %v791 = vpop.f32.mrf.mxu0
        %v792 = vadd.f32 %v743, %v791
        %v793 = vpop.f32.mrf.mxu0
        %v794 = vadd.f32 %v743, %v793
        %795 = vmatmul.bf16.gmra.mxu0 %v774
        %v796 = vpop.f32.mrf.mxu0
        %v797 = vadd.f32 %v743, %v796
        %v798 = vpop.f32.mrf.mxu0
        %v799 = vadd.f32 %v743, %v798
        %800 = vmatmul.bf16.gmra.mxu0 %v777
        %v801 = vpop.f32.mrf.mxu0
        %v802 = vadd.f32 %v743, %v801
        %v803 = vpop.f32.mrf.mxu0
        %v804 = vadd.f32 %v743, %v803
        %805 = vmatmul.bf16.gmra.mxu0 %v780
        %v806 = vpop.f32.mrf.mxu0
        %v807 = vadd.f32 %v743, %v806
        %v808 = vpop.f32.mrf.mxu0
        %v809 = vadd.f32 %v743, %v808
        %810 = vdwg.mxu0
        %v811 = vsel %vm549, %v792, 0.0
        %812 = vadd.xlane.f32.xlu0 %v811
        %v813 = vpop.xlane.xlu0 %812
        %v814 = vsel %vm549, %v794, 0.0
        %815 = vadd.xlane.f32.xlu0 %v814
        %v816 = vpop.xlane.xlu0 %815
        %v817 = vsel %vm549, %v797, 0.0
        %818 = vadd.xlane.f32.xlu0 %v817
        %v819 = vpop.xlane.xlu0 %818
        %v820 = vsel %vm549, %v799, 0.0
        %821 = vadd.xlane.f32.xlu0 %v820
        %v822 = vpop.xlane.xlu0 %821
        %v823 = vsel %vm549, %v802, 0.0
        %824 = vadd.xlane.f32.xlu0 %v823
        %v825 = vpop.xlane.xlu0 %824
        %v826 = vsel %vm549, %v804, 0.0
        %827 = vadd.xlane.f32.xlu0 %v826
        %v828 = vpop.xlane.xlu0 %827
        %v829 = vsel %vm549, %v807, 0.0
        %830 = vadd.xlane.f32.xlu0 %v829
        %v831 = vpop.xlane.xlu0 %830
        %v832 = vsel %vm549, %v809, 0.0
        %833 = vadd.xlane.f32.xlu0 %v832
        %v834 = vpop.xlane.xlu0 %833
        %v835 = vrcp.pop 32.0
        %v836 = vmul.f32 32.0, %v835
        %v837 = vsub.f32 1.0, %v836
        %v838 = vmul.f32 %v835, %v837
        %v839 = vadd.f32 %v835, %v838
        %vm840 = vweird.f32 %v835
        %v841 = vsel %vm840, %v835, %v839
        %v842 = vmul.f32 %v813, %v841
        %v843 = vmul.f32 %v816, %v841
        %v844 = vmul.f32 %v819, %v841
        %v845 = vmul.f32 %v822, %v841
        %v846 = vmul.f32 %v825, %v841
        %v847 = vmul.f32 %v828, %v841
        %v848 = vmul.f32 %v831, %v841
        %v849 = vmul.f32 %v834, %v841
        %v850 = vsub.f32 %v792, %v842
        %v851 = vsub.f32 %v794, %v843
        %v852 = vsub.f32 %v797, %v844
        %v853 = vsub.f32 %v799, %v845
        %v854 = vsub.f32 %v802, %v846
        %v855 = vsub.f32 %v804, %v847
        %v856 = vsub.f32 %v807, %v848
        %v857 = vsub.f32 %v809, %v849
        %v858 = vmul.f32 %v850, %v850
        %v859 = vmul.f32 %v851, %v851
        %v860 = vmul.f32 %v852, %v852
        %v861 = vmul.f32 %v853, %v853
        %v862 = vmul.f32 %v854, %v854
        %v863 = vmul.f32 %v855, %v855
        %v864 = vmul.f32 %v856, %v856
        %v865 = vmul.f32 %v857, %v857
        %v866 = vsel %vm549, %v858, 0.0
        %867 = vadd.xlane.f32.xlu0 %v866
        %v868 = vpop.xlane.xlu0 %867
        %v869 = vsel %vm549, %v859, 0.0
        %870 = vadd.xlane.f32.xlu0 %v869
        %v871 = vpop.xlane.xlu0 %870
        %v872 = vsel %vm549, %v860, 0.0
        %873 = vadd.xlane.f32.xlu0 %v872
        %v874 = vpop.xlane.xlu0 %873
        %v875 = vsel %vm549, %v861, 0.0
        %876 = vadd.xlane.f32.xlu0 %v875
        %v877 = vpop.xlane.xlu0 %876
        %v878 = vsel %vm549, %v862, 0.0
        %879 = vadd.xlane.f32.xlu0 %v878
        %v880 = vpop.xlane.xlu0 %879
        %v881 = vsel %vm549, %v863, 0.0
        %882 = vadd.xlane.f32.xlu0 %v881
        %v883 = vpop.xlane.xlu0 %882
        %v884 = vsel %vm549, %v864, 0.0
        %885 = vadd.xlane.f32.xlu0 %v884
        %v886 = vpop.xlane.xlu0 %885
        %v887 = vsel %vm549, %v865, 0.0
        %888 = vadd.xlane.f32.xlu0 %v887
        %v889 = vpop.xlane.xlu0 %888
        %v890 = vmul.f32 %v868, %v841
        %v891 = vmul.f32 %v871, %v841
        %v892 = vmul.f32 %v874, %v841
        %v893 = vmul.f32 %v877, %v841
        %v894 = vmul.f32 %v880, %v841
        %v895 = vmul.f32 %v883, %v841
        %v896 = vmul.f32 %v886, %v841
        %v897 = vmul.f32 %v889, %v841
        %v898 = vadd.f32 %v890, 1e-05
        %v899 = vadd.f32 %v891, 1e-05
        %v900 = vadd.f32 %v892, 1e-05
        %v901 = vadd.f32 %v893, 1e-05
        %v902 = vadd.f32 %v894, 1e-05
        %v903 = vadd.f32 %v895, 1e-05
        %v904 = vadd.f32 %v896, 1e-05
        %v905 = vadd.f32 %v897, 1e-05
        %v906 = vrsqrt.pop %v898
        %v907 = vmul.f32 %v906, %v898
        %v908 = vmul.f32 %v907, %v906
        %v909 = vmul.f32 0.5, %v908
        %v910 = vsub.f32 1.5, %v909
        %v911 = vmul.f32 %v906, %v910
        %vm912 = vweird.f32 %v898
        %vm913 = vweird.f32 %v906
        %vm914 = vmor %vm912, %vm913
        %v915 = vsel %vm914, %v906, %v911
        %v916 = vrsqrt.pop %v899
        %v917 = vmul.f32 %v916, %v899
        %v918 = vmul.f32 %v917, %v916
        %v919 = vmul.f32 0.5, %v918
        %v920 = vsub.f32 1.5, %v919
        %v921 = vmul.f32 %v916, %v920
        %vm922 = vweird.f32 %v899
        %vm923 = vweird.f32 %v916
        %vm924 = vmor %vm922, %vm923
        %v925 = vsel %vm924, %v916, %v921
        %v926 = vrsqrt.pop %v900
        %v927 = vmul.f32 %v926, %v900
        %v928 = vmul.f32 %v927, %v926
        %v929 = vmul.f32 0.5, %v928
        %v930 = vsub.f32 1.5, %v929
        %v931 = vmul.f32 %v926, %v930
        %vm932 = vweird.f32 %v900
        %vm933 = vweird.f32 %v926
        %vm934 = vmor %vm932, %vm933
        %v935 = vsel %vm934, %v926, %v931
        %v936 = vrsqrt.pop %v901
        %v937 = vmul.f32 %v936, %v901
        %v938 = vmul.f32 %v937, %v936
        %v939 = vmul.f32 0.5, %v938
        %v940 = vsub.f32 1.5, %v939
        %v941 = vmul.f32 %v936, %v940
        %vm942 = vweird.f32 %v901
        %vm943 = vweird.f32 %v936
        %vm944 = vmor %vm942, %vm943
        %v945 = vsel %vm944, %v936, %v941
        %v946 = vrsqrt.pop %v902
        %v947 = vmul.f32 %v946, %v902
        %v948 = vmul.f32 %v947, %v946
        %v949 = vmul.f32 0.5, %v948
        %v950 = vsub.f32 1.5, %v949
        %v951 = vmul.f32 %v946, %v950
        %vm952 = vweird.f32 %v902
        %vm953 = vweird.f32 %v946
        %vm954 = vmor %vm952, %vm953
        %v955 = vsel %vm954, %v946, %v951
        %v956 = vrsqrt.pop %v903
        %v957 = vmul.f32 %v956, %v903
        %v958 = vmul.f32 %v957, %v956
        %v959 = vmul.f32 0.5, %v958
        %v960 = vsub.f32 1.5, %v959
        %v961 = vmul.f32 %v956, %v960
        %vm962 = vweird.f32 %v903
        %vm963 = vweird.f32 %v956
        %vm964 = vmor %vm962, %vm963
        %v965 = vsel %vm964, %v956, %v961
        %v966 = vrsqrt.pop %v904
        %v967 = vmul.f32 %v966, %v904
        %v968 = vmul.f32 %v967, %v966
        %v969 = vmul.f32 0.5, %v968
        %v970 = vsub.f32 1.5, %v969
        %v971 = vmul.f32 %v966, %v970
        %vm972 = vweird.f32 %v904
        %vm973 = vweird.f32 %v966
        %vm974 = vmor %vm972, %vm973
        %v975 = vsel %vm974, %v966, %v971
        %v976 = vrsqrt.pop %v905
        %v977 = vmul.f32 %v976, %v905
        %v978 = vmul.f32 %v977, %v976
        %v979 = vmul.f32 0.5, %v978
        %v980 = vsub.f32 1.5, %v979
        %v981 = vmul.f32 %v976, %v980
        %vm982 = vweird.f32 %v905
        %vm983 = vweird.f32 %v976
        %vm984 = vmor %vm982, %vm983
        %v985 = vsel %vm984, %v976, %v981
        %v986 = vmul.f32 %v850, %v915
        %v987 = vmul.f32 %v851, %v925
        %v988 = vmul.f32 %v852, %v935
        %v989 = vmul.f32 %v853, %v945
        %v990 = vmul.f32 %v854, %v955
        %v991 = vmul.f32 %v855, %v965
        %v992 = vmul.f32 %v856, %v975
        %v993 = vmul.f32 %v857, %v985
        %v994 = vld [vmem:[%s9] sm:$0x1]
        %v996 = vperm.slane %v994, 0
        %v998 = vmul.f32 %v986, %v996
        %v999 = vmul.f32 %v987, %v996
        %v1000 = vmul.f32 %v988, %v996
        %v1001 = vmul.f32 %v989, %v996
        %v1002 = vmul.f32 %v990, %v996
        %v1003 = vmul.f32 %v991, %v996
        %v1004 = vmul.f32 %v992, %v996
        %v1005 = vmul.f32 %v993, %v996
        %v1006 = vld [vmem:[%s10] sm:$0x1]
        %v1008 = vperm.slane %v1006, 0
        %v1010 = vadd.f32 %v998, %v1008
        %v1011 = vadd.f32 %v999, %v1008
        %v1012 = vadd.f32 %v1000, %v1008
        %v1013 = vadd.f32 %v1001, %v1008
        %v1014 = vadd.f32 %v1002, %v1008
        %v1015 = vadd.f32 %v1003, %v1008
        %v1016 = vadd.f32 %v1004, %v1008
        %v1017 = vadd.f32 %v1005, %v1008
        %v1018 = vadd.f32 %v517, %v1010
        %v1019 = vadd.f32 %v518, %v1011
        %v1020 = vadd.f32 %v519, %v1012
        %v1021 = vadd.f32 %v520, %v1013
        %v1022 = vadd.f32 %v521, %v1014
        %v1023 = vadd.f32 %v522, %v1015
        %v1024 = vadd.f32 %v523, %v1016
        %v1025 = vadd.f32 %v524, %v1017
        %1026 = vst.msk [vmem:[%s444] sm:$0xff] %vm549, %v1018
        %1027 = vst.msk [vmem:[%s444 + $0x8] sm:$0xff] %vm549, %v1019
        %1028 = vst.msk [vmem:[%s444 + $0x10] sm:$0xff] %vm549, %v1020
        %1029 = vst.msk [vmem:[%s444 + $0x18] sm:$0xff] %vm549, %v1021
        %1030 = vst.msk [vmem:[%s444 + $0x20] sm:$0xff] %vm549, %v1022
        %1031 = vst.msk [vmem:[%s444 + $0x28] sm:$0xff] %vm549, %v1023
        %1032 = vst.msk [vmem:[%s444 + $0x30] sm:$0xff] %vm549, %v1024
        %1033 = vst.msk [vmem:[%s444 + $0x38] sm:$0xff] %vm549, %v1025
        %s1034 = sand.u32 %s276, 1
        %s1035 = sand.u32 %s276, 1
        %s1036 = smul.addr %s1035, 64
        %s1037 = scalar_lea.vmem [#allocation2], %s1036
        // Predicated region
        $region65: #{tpu_custom_call.1} parent=63 // pred_check
          %p1038 = pneg %p286
        $region66: #{tpu_custom_call.1} parent=63 // pred_check_branch
          %1040 = sbr.rel (%p1038) target = $region68
        $region67: #{tpu_custom_call.1} parent=63 // pred_region
          %s1041 = smul.u32 8, %s22
          %s1042 = ssub.s32 25, %s1041
          %p1043 = scmp.lt.s32.totalorder %s1042, 8
          %s1044 = scalar_select %p1043, %s1042, 8
          %s1045 = smul.u32 8, %s1044
          %p1046 = scmp.ne.s32.totalorder 0, %s1045
          %s1047 = smul.addr %s1041, 8
          %s1048 = scalar_lea.vmem %s11, %s1047
          // Predicated region
          $region69: #{tpu_custom_call.1} parent=67 // pred_check
            %p1049 = pneg %p1046
          $region70: #{tpu_custom_call.1} parent=67 // pred_check_branch
            %1051 = sbr.rel (%p1049) target = $region72
          $region71: #{tpu_custom_call.1} parent=67 // pred_region
            // Predicated region
            $region73: #{tpu_custom_call.1} parent=71 // pred_check
              _
            $region74: #{tpu_custom_call.1} parent=71 // pred_check_branch
              %1053 = sbr.rel (0) target = $region76
            $region75: #{tpu_custom_call.1} parent=71 // pred_region
              // Predicated region
              $region95: #{tpu_custom_call.1} parent=75 // pred_check
                _
              $region96: #{tpu_custom_call.1} parent=75 // pred_check_branch
                %1117 = sbr.rel (0) target = $region98
              $region97: #{tpu_custom_call.1} parent=75 // pred_region
                %s1118 = sshrl.u32 %s1044, 3
                // While loop
                $region99: #{tpu_custom_call.1} parent=97 // loop_pre_header
                  _
                $region100: #{tpu_custom_call.1} parent=97 // loop_header
                  %s1120 = sphi 0, %s1122
                  %p1121 = scmp.ge.s32.totalorder %s1120, %s1118
                  %s1125 = sphi 0, %s1146
                  %s1126 = sphi %s1037, %s1149
                  %s1127 = sphi %s1048, %s1150
                $region101: #{tpu_custom_call.1} parent=97 // loop_header_branch
                  %1124 = sbr.rel (%p1121) target = $region105
                $region102: #{tpu_custom_call.1} parent=97 // loop_body
                  %v1128 = vld [vmem:[%s1126] sm:$0xff]
                  %1129 = vst [vmem:[%s1127] sm:$0xff] %v1128
                  %v1130 = vld [vmem:[%s1126 + $0x8] sm:$0xff]
                  %1131 = vst [vmem:[%s1127 + $0x8] sm:$0xff] %v1130
                  %v1132 = vld [vmem:[%s1126 + $0x10] sm:$0xff]
                  %1133 = vst [vmem:[%s1127 + $0x10] sm:$0xff] %v1132
                  %v1134 = vld [vmem:[%s1126 + $0x18] sm:$0xff]
                  %1135 = vst [vmem:[%s1127 + $0x18] sm:$0xff] %v1134
                  %v1136 = vld [vmem:[%s1126 + $0x20] sm:$0xff]
                  %1137 = vst [vmem:[%s1127 + $0x20] sm:$0xff] %v1136
                  %v1138 = vld [vmem:[%s1126 + $0x28] sm:$0xff]
                  %1139 = vst [vmem:[%s1127 + $0x28] sm:$0xff] %v1138
                  %v1140 = vld [vmem:[%s1126 + $0x30] sm:$0xff]
                  %1141 = vst [vmem:[%s1127 + $0x30] sm:$0xff] %v1140
                  %v1142 = vld [vmem:[%s1126 + $0x38] sm:$0xff]
                  %1143 = vst [vmem:[%s1127 + $0x38] sm:$0xff] %v1142
                  %s1144 = sadd.s32 1, %s1125
                  %p1145 = scmp.ge.s32.totalorder %s1144, %s1118
                  %s1146 = scalar_select %p1145, 0, %s1144
                  %s1147 = smul.u32 %s1146, 64
                  %s1148 = smul.u32 %s1146, 64
                  %s1149 = scalar_lea.vmem %s1037, %s1147 [#allocation2]
                  %s1150 = scalar_lea.vmem %s1048, %s1148
                $region103: #{tpu_custom_call.1} parent=97 // loop_footer
                  %s1122 = sadd.s32 %s1120, 1
                $region104: #{tpu_custom_call.1} parent=97 // loop_footer_branch
                  %1119 = sbr.rel target = $region100
                $region105: #{tpu_custom_call.1} parent=97 // loop_exit
                  _
                %s1151 = sshrl.u32 %s1044, 3
                %s1152 = sand.u32 %s1044, 7
                %s1153 = smul.u32 %s1151, 8
                %s1154 = smul.u32 8, %s1153
                %s1155 = scalar_lea.vmem %s1037, %s1154 [#allocation2]
                %s1156 = smul.u32 8, %s1153
                %s1157 = scalar_lea.vmem %s1048, %s1156
                // While loop
                $region106: #{tpu_custom_call.1} parent=97 // loop_pre_header
                  _
                $region107: #{tpu_custom_call.1} parent=97 // loop_header
                  %s1159 = sphi 0, %s1161
                  %p1160 = scmp.ge.s32.totalorder %s1159, %s1152
                  %s1164 = sphi 0, %s1171
                  %s1165 = sphi %s1155, %s1174
                  %s1166 = sphi %s1157, %s1175
                $region108: #{tpu_custom_call.1} parent=97 // loop_header_branch
                  %1163 = sbr.rel (%p1160) target = $region112
                $region109: #{tpu_custom_call.1} parent=97 // loop_body
                  %v1167 = vld [vmem:[%s1165] sm:$0xff]
                  %1168 = vst [vmem:[%s1166] sm:$0xff] %v1167
                  %s1169 = sadd.s32 1, %s1164
                  %p1170 = scmp.ge.s32.totalorder %s1169, %s1152
                  %s1171 = scalar_select %p1170, 0, %s1169
                  %s1172 = smul.u32 %s1171, 8
                  %s1173 = smul.u32 %s1171, 8
                  %s1174 = scalar_lea.vmem %s1155, %s1172 [#allocation2]
                  %s1175 = scalar_lea.vmem %s1157, %s1173
                $region110: #{tpu_custom_call.1} parent=97 // loop_footer
                  %s1161 = sadd.s32 %s1159, 1
                $region111: #{tpu_custom_call.1} parent=97 // loop_footer_branch
                  %1158 = sbr.rel target = $region107
                $region112: #{tpu_custom_call.1} parent=97 // loop_exit
                  _
              $region98: #{tpu_custom_call.1} parent=75 // pred_fallthru
                _
              // Predicated region
              $region113: #{tpu_custom_call.1} parent=75 // pred_check
                _
              $region114: #{tpu_custom_call.1} parent=75 // pred_check_branch
                %1177 = sbr.rel target = $region116
              $region115: #{tpu_custom_call.1} parent=75 // pred_region
                _
              $region116: #{tpu_custom_call.1} parent=75 // pred_fallthru
                _
            $region76: #{tpu_custom_call.1} parent=71 // pred_fallthru
              _
            // Predicated region
            $region77: #{tpu_custom_call.1} parent=71 // pred_check
              _
            $region78: #{tpu_custom_call.1} parent=71 // pred_check_branch
              %1055 = sbr.rel target = $region80
            $region79: #{tpu_custom_call.1} parent=71 // pred_region
              %s1057 = ssub.s32 256, 1
              %s1058 = sshrl.u32 %s1044, 3
              // While loop
              $region81: #{tpu_custom_call.1} parent=79 // loop_pre_header
                _
              $region82: #{tpu_custom_call.1} parent=79 // loop_header
                %s1060 = sphi 0, %s1062
                %p1061 = scmp.ge.s32.totalorder %s1060, %s1058
                %s1065 = sphi 0, %s1086
                %s1066 = sphi %s1037, %s1089
                %s1067 = sphi %s1048, %s1090
              $region83: #{tpu_custom_call.1} parent=79 // loop_header_branch
                %1064 = sbr.rel (%p1061) target = $region87
              $region84: #{tpu_custom_call.1} parent=79 // loop_body
                %v1068 = vld [vmem:[%s1066] sm:%s1057]
                %1069 = vst [vmem:[%s1067] sm:%s1057] %v1068
                %v1070 = vld [vmem:[%s1066 + $0x8] sm:%s1057]
                %1071 = vst [vmem:[%s1067 + $0x8] sm:%s1057] %v1070
                %v1072 = vld [vmem:[%s1066 + $0x10] sm:%s1057]
                %1073 = vst [vmem:[%s1067 + $0x10] sm:%s1057] %v1072
                %v1074 = vld [vmem:[%s1066 + $0x18] sm:%s1057]
                %1075 = vst [vmem:[%s1067 + $0x18] sm:%s1057] %v1074
                %v1076 = vld [vmem:[%s1066 + $0x20] sm:%s1057]
                %1077 = vst [vmem:[%s1067 + $0x20] sm:%s1057] %v1076
                %v1078 = vld [vmem:[%s1066 + $0x28] sm:%s1057]
                %1079 = vst [vmem:[%s1067 + $0x28] sm:%s1057] %v1078
                %v1080 = vld [vmem:[%s1066 + $0x30] sm:%s1057]
                %1081 = vst [vmem:[%s1067 + $0x30] sm:%s1057] %v1080
                %v1082 = vld [vmem:[%s1066 + $0x38] sm:%s1057]
                %1083 = vst [vmem:[%s1067 + $0x38] sm:%s1057] %v1082
                %s1084 = sadd.s32 1, %s1065
                %p1085 = scmp.ge.s32.totalorder %s1084, %s1058
                %s1086 = scalar_select %p1085, 0, %s1084
                %s1087 = smul.u32 %s1086, 64
                %s1088 = smul.u32 %s1086, 64
                %s1089 = scalar_lea.vmem %s1037, %s1087 [#allocation2]
                %s1090 = scalar_lea.vmem %s1048, %s1088
              $region85: #{tpu_custom_call.1} parent=79 // loop_footer
                %s1062 = sadd.s32 %s1060, 1
              $region86: #{tpu_custom_call.1} parent=79 // loop_footer_branch
                %1059 = sbr.rel target = $region82
              $region87: #{tpu_custom_call.1} parent=79 // loop_exit
                _
              %s1091 = sshrl.u32 %s1044, 3
              %s1092 = sand.u32 %s1044, 7
              %s1093 = smul.u32 %s1091, 8
              %s1094 = smul.u32 8, %s1093
              %s1095 = scalar_lea.vmem %s1037, %s1094 [#allocation2]
              %s1096 = smul.u32 8, %s1093
              %s1097 = scalar_lea.vmem %s1048, %s1096
              // While loop
              $region88: #{tpu_custom_call.1} parent=79 // loop_pre_header
                _
              $region89: #{tpu_custom_call.1} parent=79 // loop_header
                %s1099 = sphi 0, %s1101
                %p1100 = scmp.ge.s32.totalorder %s1099, %s1092
                %s1104 = sphi 0, %s1111
                %s1105 = sphi %s1095, %s1114
                %s1106 = sphi %s1097, %s1115
              $region90: #{tpu_custom_call.1} parent=79 // loop_header_branch
                %1103 = sbr.rel (%p1100) target = $region94
              $region91: #{tpu_custom_call.1} parent=79 // loop_body
                %v1107 = vld [vmem:[%s1105] sm:%s1057]
                %1108 = vst [vmem:[%s1106] sm:%s1057] %v1107
                %s1109 = sadd.s32 1, %s1104
                %p1110 = scmp.ge.s32.totalorder %s1109, %s1092
                %s1111 = scalar_select %p1110, 0, %s1109
                %s1112 = smul.u32 %s1111, 8
                %s1113 = smul.u32 %s1111, 8
                %s1114 = scalar_lea.vmem %s1095, %s1112 [#allocation2]
                %s1115 = scalar_lea.vmem %s1097, %s1113
              $region92: #{tpu_custom_call.1} parent=79 // loop_footer
                %s1101 = sadd.s32 %s1099, 1
              $region93: #{tpu_custom_call.1} parent=79 // loop_footer_branch
                %1098 = sbr.rel target = $region89
              $region94: #{tpu_custom_call.1} parent=79 // loop_exit
                _
            $region80: #{tpu_custom_call.1} parent=71 // pred_fallthru
              _
          $region72: #{tpu_custom_call.1} parent=67 // pred_fallthru
            _
          %1178 = vnop
        $region68: #{tpu_custom_call.1} parent=63 // pred_fallthru
          _
      $region64: #{tpu_custom_call.1} parent=5 // pred_fallthru
        _
      %p1179 = scmp.le.s32.totalorder 2, %s17
      // Predicated region
      $region117: #{tpu_custom_call.1} parent=5 // pred_check
        %p1180 = pneg %p1179
      $region118: #{tpu_custom_call.1} parent=5 // pred_check_branch
        %1182 = sbr.rel (%p1180) target = $region120
      $region119: #{tpu_custom_call.1} parent=5 // pred_region
        %s1183 = ssub.s32 %s17, 2
        // Predicated region
        $region121: #{tpu_custom_call.1} parent=119 // pred_check
          %p1184 = pneg %p292
        $region122: #{tpu_custom_call.1} parent=119 // pred_check_branch
          %1186 = sbr.rel (%p1184) target = $region124
        $region123: #{tpu_custom_call.1} parent=119 // pred_region
          %s1187 = sand.u32 %s277, 1
          %s1188 = sand.u32 %s277, 1
          %s1189 = smul.addr %s1188, 64
          %s1190 = scalar_lea.vmem [#allocation2], %s1189
        $region124: #{tpu_custom_call.1} parent=119 // pred_fallthru
          _
      $region120: #{tpu_custom_call.1} parent=5 // pred_fallthru
        _
    $region6: #{tpu_custom_call.1} parent=1 // loop_footer
      %s21 = sadd.s32 1, %s17
    $region7: #{tpu_custom_call.1} parent=1 // loop_footer_branch
      %16 = sbr.rel target = $region3
    $region8: #{tpu_custom_call.1} parent=1 // loop_exit
      _

</llo_original>
